<compile_context>
chip_gen: v5e
topology: v5e:2x2
jax: 0.10.0
libtpu: 0.0.40
codegen_flags: <defaults>
</compile_context>

<pallas_src>
import functools
import math

import jax
import jax.numpy as jnp
from jax.experimental import pallas as pl
from jax.experimental.pallas import tpu as pltpu


# ----------------------------- fused Pallas kernel ---------------------------

def _make_fused_kernel(tn, filter_size, block_plan, n_blocks, h):
    """block_plan: tuple of dicts with static per-block geometry
    (stride, L_in, L_out, C_in, pad_l, pad_r)."""
    f = filter_size

    def kernel(*refs):
        x_ref = refs[0]                                        # (L0, TN, C0) VMEM
        w_refs = [refs[1 + 2 * i] for i in range(n_blocks)]    # (f, C_in, H) pre-scaled
        b_refs = [refs[2 + 2 * i] for i in range(n_blocks)]    # (1, H)       pre-scaled
        beta_ref = refs[1 + 2 * n_blocks]                      # (H, O_pad)   pre-scaled
        bias_ref = refs[2 + 2 * n_blocks]                      # (1,) SMEM scalar
        o_ref = refs[3 + 2 * n_blocks]                         # (TN, O_pad)

        y = x_ref[...]                                         # (L0, TN, C0) length-major
        for bi, bp in enumerate(block_plan):
            stride, L_in, L_out = bp["stride"], bp["L_in"], bp["L_out"]
            C_in, pad_l, pad_r = bp["C_in"], bp["pad_l"], bp["pad_r"]

            # circular pad along the leading length axis: whole-tile copies, no relayout
            parts = []
            if pad_l > 0:
                parts.append(y[L_in - pad_l:])
            parts.append(y)
            if pad_r > 0:
                parts.append(y[:pad_r])
            yp = jnp.concatenate(parts, axis=0) if len(parts) > 1 else y  # (L_in+f-1, TN, C_in)

            # batched conv: f tap matmuls, M = L_in*TN, f32 accumulate.
            b_val = b_refs[bi][...]                             # (1, H)
            acc = None
            for t in range(f):
                slab = yp[t:t + L_in]                           # (L_in, TN, C_in)
                slab2 = slab.reshape(L_in * tn, C_in)           # layout-preserving (TN % 8 == 0)
                w_t = w_refs[bi][t]                             # (C_in, H)
                d = jnp.dot(slab2, w_t, preferred_element_type=jnp.float32)
                acc = d if acc is None else acc + d
            z = jnp.maximum(acc + b_val, 0.0)                   # (L_in*TN, H)

            if stride == 1:
                y = z.reshape(L_in, tn, h)
            else:
                # take stride-1 output rows 0, s, 2s, ... via a major-dim reshape + slice
                z3 = z.reshape(L_in, tn, h)
                L_sel = L_out * stride
                if L_sel > L_in:
                    z3 = jnp.concatenate(
                        [z3, jnp.zeros((L_sel - L_in, tn, h), jnp.float32)], axis=0)
                y = z3.reshape(L_out, stride, tn, h)[:, 0]      # (L_out, TN, H)

        # GAP: plain sum over length; 1/L_final, 1/h, alpha_tilde are folded into beta.
        ysum = jnp.sum(y, axis=0)                               # (TN, H)
        out = jnp.dot(ysum, beta_ref[...], preferred_element_type=jnp.float32)
        o_ref[...] = out + bias_ref[0]                          # (TN, O_pad), full-lane store

    return kernel


# ------------------------------- wrapper (glue) -------------------------------

def _pad_sizes(filter_size):
    if filter_size % 2 != 0:
        return (filter_size - 1) // 2, (filter_size - 1) // 2
    return filter_size // 2 - 1, filter_size // 2


def build_block_strides(n_blocks, idx_strides, stride_int):
    strides = [stride_int]  # first block always stride_int
    bb = 0
    for aa in range(1, n_blocks):
        if aa == idx_strides[bb]:
            strides.append(stride_int)
            if bb < len(idx_strides) - 1:
                bb += 1
        else:
            strides.append(1)
    return strides


def _choose_tn(n, L0, tn_max=256, vmem_budget_bytes=20 << 20, live_factor=16):
    """Batch tile: multiple of 8, capped by a VMEM working-set estimate.

    Per-sample live footprint ~ live_factor * L0 * 128 lanes * 4B (activations,
    padded tap slabs, f32 accumulators; lane widths pad to 128 in vregs).  Keeping the
    estimate well under the v7x 64 MiB VMEM ceiling leaves room for double-buffered
    input blocks and the (tiny) resident weights."""
    per_sample = max(1, live_factor * L0 * 128 * 4)
    tn = vmem_budget_bytes // per_sample
    tn = int(min(tn, tn_max))
    n_pad8 = ((max(int(n), 1) + 7) // 8) * 8
    tn = min(tn, n_pad8)
    tn = max(8, (tn // 8) * 8)
    return tn


def convnet_gapmf_forward(x_ncl, params, cfg, tn_max=256):
    """x_ncl: (N, C_in, L) float32 (PyTorch NCL layout). Returns (N, out_dim)."""
    f = int(cfg["filter_size"])
    alpha = float(cfg["alpha_tilde"])
    strides = build_block_strides(int(cfg["n_blocks"]), list(cfg["idx_strides"]),
                                  int(cfg["stride_int"]))

    ws = params["block_w"]
    bs = params["block_b"]
    beta = params["beta"]
    bias_final = params["biasFinal"]
    n_blocks = len(ws)
    h = int(ws[-1].shape[0])
    out_dim = int(beta.shape[1])

    N, C0, L0 = x_ncl.shape
    # single layout change at the boundary: NCL -> length-major (L, N, C)
    x = jnp.transpose(x_ncl, (2, 0, 1)).astype(jnp.float32)            # (L, N, C)

    # ---- static per-block geometry ----
    # TODO(synk): for very long L, tile the length axis with circular halo exchange
    # instead of keeping the full per-sample sequence resident in VMEM.
    block_plan = []
    L_cur, c_in = L0, C0
    for bi, s in enumerate(strides):
        pad_l, pad_r = _pad_sizes(f)
        L_out = (L_cur + pad_l + pad_r - f) // s + 1
        block_plan.append(dict(stride=int(s), L_in=int(L_cur), L_out=int(L_out),
                               C_in=int(c_in), pad_l=int(pad_l), pad_r=int(pad_r)))
        L_cur = L_out
        c_in = int(ws[bi].shape[0])
    L_final = L_cur
    block_plan = tuple(block_plan)

    # ---- fold every scalar factor into the parameters (once per call) ----
    op_w, op_b = [], []
    for w, b in zip(ws, bs):
        H, C_in_w, ff = w.shape
        scale = math.sqrt(ff) / math.sqrt(C_in_w * ff)                  # sqrt(f)/sqrt(hn)
        op_w.append((jnp.transpose(w, (2, 1, 0)) * scale).astype(jnp.float32))  # (f, C_in, H)
        op_b.append((b * math.sqrt(ff)).reshape(1, H).astype(jnp.float32))
    out_pad = ((out_dim + 127) // 128) * 128                            # lane-dense output
    beta_s = jnp.zeros((h, out_pad), jnp.float32).at[:, :out_dim].set(
        beta * (alpha / (h * L_final)))
    bias_s = (bias_final.reshape(-1)[:1] * alpha).astype(jnp.float32)   # (1,) SMEM scalar

    # ---- batch tiling: grid over samples, "parallel" for v7x megacore ----
    tn = _choose_tn(N, L0, tn_max)
    n_pad = ((N + tn - 1) // tn) * tn
    if n_pad != N:
        # padded (zero) samples produce garbage rows; sliced away below (keep out[:N]).
        x = jnp.pad(x, ((0, 0), (0, n_pad - N), (0, 0)))

    kernel = _make_fused_kernel(tn, f, block_plan, n_blocks, h)

    in_specs = [pl.BlockSpec((L0, tn, C0), lambda n: (0, n, 0))]
    operands = [x]
    for bi in range(n_blocks):
        ff, C_in_b, H = op_w[bi].shape
        in_specs.append(pl.BlockSpec((ff, C_in_b, H), lambda n: (0, 0, 0)))
        in_specs.append(pl.BlockSpec((1, H), lambda n: (0, 0)))
        operands.extend([op_w[bi], op_b[bi]])
    in_specs.append(pl.BlockSpec((h, out_pad), lambda n: (0, 0)))
    in_specs.append(pl.BlockSpec(memory_space=pltpu.MemorySpace.SMEM))
    operands.extend([beta_s, bias_s])

    out = pl.pallas_call(
        kernel,
        out_shape=jax.ShapeDtypeStruct((n_pad, out_pad), jnp.float32),
        grid=(n_pad // tn,),
        in_specs=in_specs,
        out_specs=pl.BlockSpec((tn, out_pad), lambda n: (n, 0)),
        compiler_params=pltpu.CompilerParams(
            dimension_semantics=("parallel",),
            # 48 MiB fits every generation (v7x physical VMEM is 64 MiB).
            vmem_limit_bytes=48 * 1024 * 1024,
        ),
    )(*operands)
    return out[:N, :out_dim]


# ----------------------- parameter construction ----------------------------

def init_params(key, cfg):
    n_blocks = cfg["n_blocks"]
    input_ch = cfg["input_ch"]
    h = cfg["h"]
    f = cfg["filter_size"]
    out_dim = cfg["out_dim"]

    keys = jax.random.split(key, 2 * n_blocks + 2)
    block_w, block_b = [], []
    c_in = input_ch
    for i in range(n_blocks):
        block_w.append(jax.random.normal(keys[2 * i], (h, c_in, f), dtype=jnp.float32))
        block_b.append(jax.random.normal(keys[2 * i + 1], (h,), dtype=jnp.float32))
        c_in = h
    beta = jax.random.normal(keys[-2], (h, out_dim), dtype=jnp.float32)
    bias_final = jax.random.normal(keys[-1], (1,), dtype=jnp.float32)
    return {"block_w": block_w, "block_b": block_b, "beta": beta, "biasFinal": bias_final}


# ------------------------ pure-JAX reference (check) ------------------------

def _circular_pad_ncl(x, pad_l, pad_r):
    parts = []
    if pad_l > 0:
        parts.append(x[:, :, -pad_l:])
    parts.append(x)
    if pad_r > 0:
        parts.append(x[:, :, :pad_r])
    return jnp.concatenate(parts, axis=-1)


def ref_forward(x, params, cfg):
    f = cfg["filter_size"]
    strides = build_block_strides(cfg["n_blocks"], cfg["idx_strides"], cfg["stride_int"])
    y = x
    for w, b, s in zip(params["block_w"], params["block_b"], strides):
        pad_l, pad_r = _pad_sizes(f)
        yp = _circular_pad_ncl(y, pad_l, pad_r)
        hn = w.shape[1] * w.shape[2]
        y = jax.lax.conv_general_dilated(
            yp, w / math.sqrt(hn), window_strides=(s,), padding="VALID",
            dimension_numbers=("NCH", "OIH", "NCH"))
        y = y + b[None, :, None]
        y = math.sqrt(f) * jnp.maximum(y, 0.0)
    ym = y.mean(axis=-1)                                        # (N, h)
    h = params["beta"].shape[0]
    return (params["biasFinal"] + ym @ params["beta"] / h) * cfg["alpha_tilde"]


# --------------------------------- main -------------------------------------

if __name__ == "__main__":
    cfg = dict(
        alpha_tilde=0.5,
        n_blocks=3,
        input_ch=3,
        h=32,
        idx_strides=[2],
        filter_size=3,
        stride_int=2,
        out_dim=4,
    )
    key = jax.random.PRNGKey(0)
    kp, kx = jax.random.split(key)
    params = init_params(kp, cfg)

    N, L = 2, 16
    x = jax.random.normal(kx, (N, cfg["input_ch"], L), dtype=jnp.float32)  # NCL

    fwd = jax.jit(functools.partial(convnet_gapmf_forward, cfg=cfg))
    out = jax.block_until_ready(fwd(x, params))

    ref = jax.block_until_ready(ref_forward(x, params, cfg))
    assert out.shape == (N, cfg["out_dim"]), out.shape
    assert jnp.allclose(out, ref, rtol=1e-4, atol=1e-4), (out, ref)

    print("KERNEL_OK")
</pallas_src>

<mosaic_0001>
module attributes {stable_mosaic.version = 11 : i64} {
  func.func @kernel(%arg0: i32, %arg1: memref<16x8x3xf32, #tpu.memory_space<vmem>>, %arg2: memref<3x3x32xf32, #tpu.memory_space<vmem>>, %arg3: memref<1x32xf32, #tpu.memory_space<vmem>>, %arg4: memref<3x32x32xf32, #tpu.memory_space<vmem>>, %arg5: memref<1x32xf32, #tpu.memory_space<vmem>>, %arg6: memref<3x32x32xf32, #tpu.memory_space<vmem>>, %arg7: memref<1x32xf32, #tpu.memory_space<vmem>>, %arg8: memref<32x128xf32, #tpu.memory_space<vmem>>, %arg9: memref<1xf32, #tpu.memory_space<smem>>, %arg10: memref<8x128xf32, #tpu.memory_space<vmem>>) attributes {dimension_semantics = [#tpu.dimension_semantics<parallel>], iteration_bounds = array<i64: 1>, scalar_prefetch = 0 : i64, scratch_operands = 0 : i64, tpu.core_type = #tpu.core_type<tc>, window_params = [{transform_indices = @transform_0, window_bounds = array<i64: 16, 8, 3>}, {pipeline_mode = #tpu.pipeline_mode<synchronous>, transform_indices = @transform_1, window_bounds = array<i64: 3, 3, 32>}, {pipeline_mode = #tpu.pipeline_mode<synchronous>, transform_indices = @transform_2, window_bounds = array<i64: 1, 32>}, {pipeline_mode = #tpu.pipeline_mode<synchronous>, transform_indices = @transform_3, window_bounds = array<i64: 3, 32, 32>}, {pipeline_mode = #tpu.pipeline_mode<synchronous>, transform_indices = @transform_4, window_bounds = array<i64: 1, 32>}, {pipeline_mode = #tpu.pipeline_mode<synchronous>, transform_indices = @transform_5, window_bounds = array<i64: 3, 32, 32>}, {pipeline_mode = #tpu.pipeline_mode<synchronous>, transform_indices = @transform_6, window_bounds = array<i64: 1, 32>}, {pipeline_mode = #tpu.pipeline_mode<synchronous>, transform_indices = @transform_7, window_bounds = array<i64: 32, 128>}, {transform_indices = @transform_8, window_bounds = array<i64: 1>}, {transform_indices = @transform_9, window_bounds = array<i64: 8, 128>}]} {
    %c0 = arith.constant 0 : index
    %c0_0 = arith.constant 0 : index
    %c0_1 = arith.constant 0 : index
    %0 = vector.load %arg1[%c0, %c0_0, %c0_1] : memref<16x8x3xf32, #tpu.memory_space<vmem>>, vector<16x8x3xf32>
    %1 = vector.extract_strided_slice %0 {offsets = [15, 0, 0], sizes = [1, 8, 3], strides = [1, 1, 1]} : vector<16x8x3xf32> to vector<1x8x3xf32>
    %2 = vector.extract_strided_slice %0 {offsets = [0, 0, 0], sizes = [1, 8, 3], strides = [1, 1, 1]} : vector<16x8x3xf32> to vector<1x8x3xf32>
    %3 = tpu.concatenate %1, %0, %2 in 0 : vector<1x8x3xf32>, vector<16x8x3xf32>, vector<1x8x3xf32> -> vector<18x8x3xf32>
    %c0_2 = arith.constant 0 : index
    %c0_3 = arith.constant 0 : index
    %4 = vector.load %arg3[%c0_2, %c0_3] : memref<1x32xf32, #tpu.memory_space<vmem>>, vector<1x32xf32>
    %5 = vector.extract_strided_slice %3 {offsets = [0, 0, 0], sizes = [16, 8, 3], strides = [1, 1, 1]} : vector<18x8x3xf32> to vector<16x8x3xf32>
    %6 = vector.shape_cast %5 : vector<16x8x3xf32> to vector<128x3xf32>
    %c0_4 = arith.constant 0 : index
    %c0_5 = arith.constant 0 : index
    %c0_6 = arith.constant 0 : index
    %7 = vector.load %arg2[%c0_4, %c0_5, %c0_6] : memref<3x3x32xf32, #tpu.memory_space<vmem>>, vector<1x3x32xf32>
    %8 = vector.shape_cast %7 : vector<1x3x32xf32> to vector<3x32xf32>
    %cst = arith.constant dense<0.000000e+00> : vector<128x32xf32>
    %9 = tpu.matmul %6, %8, %cst {dimension_numbers = #tpu.dot_dimension_numbers<[1], [0], [0], [1], [0, 0, 1, 1], [], []>} : vector<128x3xf32>, vector<3x32xf32>, vector<128x32xf32> -> vector<128x32xf32>
    %10 = vector.extract_strided_slice %3 {offsets = [1, 0, 0], sizes = [16, 8, 3], strides = [1, 1, 1]} : vector<18x8x3xf32> to vector<16x8x3xf32>
    %11 = vector.shape_cast %10 : vector<16x8x3xf32> to vector<128x3xf32>
    %c1 = arith.constant 1 : index
    %c0_7 = arith.constant 0 : index
    %c0_8 = arith.constant 0 : index
    %12 = vector.load %arg2[%c1, %c0_7, %c0_8] : memref<3x3x32xf32, #tpu.memory_space<vmem>>, vector<1x3x32xf32>
    %13 = vector.shape_cast %12 : vector<1x3x32xf32> to vector<3x32xf32>
    %cst_9 = arith.constant dense<0.000000e+00> : vector<128x32xf32>
    %14 = tpu.matmul %11, %13, %cst_9 {dimension_numbers = #tpu.dot_dimension_numbers<[1], [0], [0], [1], [0, 0, 1, 1], [], []>} : vector<128x3xf32>, vector<3x32xf32>, vector<128x32xf32> -> vector<128x32xf32>
    %15 = arith.addf %9, %14 : vector<128x32xf32>
    %16 = vector.extract_strided_slice %3 {offsets = [2, 0, 0], sizes = [16, 8, 3], strides = [1, 1, 1]} : vector<18x8x3xf32> to vector<16x8x3xf32>
    %17 = vector.shape_cast %16 : vector<16x8x3xf32> to vector<128x3xf32>
    %c2 = arith.constant 2 : index
    %c0_10 = arith.constant 0 : index
    %c0_11 = arith.constant 0 : index
    %18 = vector.load %arg2[%c2, %c0_10, %c0_11] : memref<3x3x32xf32, #tpu.memory_space<vmem>>, vector<1x3x32xf32>
    %19 = vector.shape_cast %18 : vector<1x3x32xf32> to vector<3x32xf32>
    %cst_12 = arith.constant dense<0.000000e+00> : vector<128x32xf32>
    %20 = tpu.matmul %17, %19, %cst_12 {dimension_numbers = #tpu.dot_dimension_numbers<[1], [0], [0], [1], [0, 0, 1, 1], [], []>} : vector<128x3xf32>, vector<3x32xf32>, vector<128x32xf32> -> vector<128x32xf32>
    %21 = arith.addf %15, %20 : vector<128x32xf32>
    %22 = vector.broadcast %4 : vector<1x32xf32> to vector<128x32xf32>
    %23 = arith.addf %21, %22 : vector<128x32xf32>
    %cst_13 = arith.constant 0.000000e+00 : f32
    %24 = vector.broadcast %cst_13 : f32 to vector<128x32xf32>
    %25 = arith.maximumf %23, %24 : vector<128x32xf32>
    %26 = vector.shape_cast %25 : vector<128x32xf32> to vector<16x8x32xf32>
    %27 = vector.shape_cast %26 : vector<16x8x32xf32> to vector<8x2x8x32xf32>
    %28 = vector.extract_strided_slice %27 {offsets = [0, 0, 0, 0], sizes = [8, 1, 8, 32], strides = [1, 1, 1, 1]} : vector<8x2x8x32xf32> to vector<8x1x8x32xf32>
    %29 = vector.shape_cast %28 : vector<8x1x8x32xf32> to vector<8x8x32xf32>
    %30 = vector.extract_strided_slice %29 {offsets = [7, 0, 0], sizes = [1, 8, 32], strides = [1, 1, 1]} : vector<8x8x32xf32> to vector<1x8x32xf32>
    %31 = vector.extract_strided_slice %29 {offsets = [0, 0, 0], sizes = [1, 8, 32], strides = [1, 1, 1]} : vector<8x8x32xf32> to vector<1x8x32xf32>
    %32 = tpu.concatenate %30, %29, %31 in 0 : vector<1x8x32xf32>, vector<8x8x32xf32>, vector<1x8x32xf32> -> vector<10x8x32xf32>
    %c0_14 = arith.constant 0 : index
    %c0_15 = arith.constant 0 : index
    %33 = vector.load %arg5[%c0_14, %c0_15] : memref<1x32xf32, #tpu.memory_space<vmem>>, vector<1x32xf32>
    %34 = vector.extract_strided_slice %32 {offsets = [0, 0, 0], sizes = [8, 8, 32], strides = [1, 1, 1]} : vector<10x8x32xf32> to vector<8x8x32xf32>
    %35 = vector.shape_cast %34 : vector<8x8x32xf32> to vector<64x32xf32>
    %c0_16 = arith.constant 0 : index
    %c0_17 = arith.constant 0 : index
    %c0_18 = arith.constant 0 : index
    %36 = vector.load %arg4[%c0_16, %c0_17, %c0_18] : memref<3x32x32xf32, #tpu.memory_space<vmem>>, vector<1x32x32xf32>
    %37 = vector.shape_cast %36 : vector<1x32x32xf32> to vector<32x32xf32>
    %cst_19 = arith.constant dense<0.000000e+00> : vector<64x32xf32>
    %38 = tpu.matmul %35, %37, %cst_19 {dimension_numbers = #tpu.dot_dimension_numbers<[1], [0], [0], [1], [0, 0, 1, 1], [], []>} : vector<64x32xf32>, vector<32x32xf32>, vector<64x32xf32> -> vector<64x32xf32>
    %39 = vector.extract_strided_slice %32 {offsets = [1, 0, 0], sizes = [8, 8, 32], strides = [1, 1, 1]} : vector<10x8x32xf32> to vector<8x8x32xf32>
    %40 = vector.shape_cast %39 : vector<8x8x32xf32> to vector<64x32xf32>
    %c1_20 = arith.constant 1 : index
    %c0_21 = arith.constant 0 : index
    %c0_22 = arith.constant 0 : index
    %41 = vector.load %arg4[%c1_20, %c0_21, %c0_22] : memref<3x32x32xf32, #tpu.memory_space<vmem>>, vector<1x32x32xf32>
    %42 = vector.shape_cast %41 : vector<1x32x32xf32> to vector<32x32xf32>
    %cst_23 = arith.constant dense<0.000000e+00> : vector<64x32xf32>
    %43 = tpu.matmul %40, %42, %cst_23 {dimension_numbers = #tpu.dot_dimension_numbers<[1], [0], [0], [1], [0, 0, 1, 1], [], []>} : vector<64x32xf32>, vector<32x32xf32>, vector<64x32xf32> -> vector<64x32xf32>
    %44 = arith.addf %38, %43 : vector<64x32xf32>
    %45 = vector.extract_strided_slice %32 {offsets = [2, 0, 0], sizes = [8, 8, 32], strides = [1, 1, 1]} : vector<10x8x32xf32> to vector<8x8x32xf32>
    %46 = vector.shape_cast %45 : vector<8x8x32xf32> to vector<64x32xf32>
    %c2_24 = arith.constant 2 : index
    %c0_25 = arith.constant 0 : index
    %c0_26 = arith.constant 0 : index
    %47 = vector.load %arg4[%c2_24, %c0_25, %c0_26] : memref<3x32x32xf32, #tpu.memory_space<vmem>>, vector<1x32x32xf32>
    %48 = vector.shape_cast %47 : vector<1x32x32xf32> to vector<32x32xf32>
    %cst_27 = arith.constant dense<0.000000e+00> : vector<64x32xf32>
    %49 = tpu.matmul %46, %48, %cst_27 {dimension_numbers = #tpu.dot_dimension_numbers<[1], [0], [0], [1], [0, 0, 1, 1], [], []>} : vector<64x32xf32>, vector<32x32xf32>, vector<64x32xf32> -> vector<64x32xf32>
    %50 = arith.addf %44, %49 : vector<64x32xf32>
    %51 = vector.broadcast %33 : vector<1x32xf32> to vector<64x32xf32>
    %52 = arith.addf %50, %51 : vector<64x32xf32>
    %cst_28 = arith.constant 0.000000e+00 : f32
    %53 = vector.broadcast %cst_28 : f32 to vector<64x32xf32>
    %54 = arith.maximumf %52, %53 : vector<64x32xf32>
    %55 = vector.shape_cast %54 : vector<64x32xf32> to vector<8x8x32xf32>
    %56 = vector.extract_strided_slice %55 {offsets = [7, 0, 0], sizes = [1, 8, 32], strides = [1, 1, 1]} : vector<8x8x32xf32> to vector<1x8x32xf32>
    %57 = vector.extract_strided_slice %55 {offsets = [0, 0, 0], sizes = [1, 8, 32], strides = [1, 1, 1]} : vector<8x8x32xf32> to vector<1x8x32xf32>
    %58 = tpu.concatenate %56, %55, %57 in 0 : vector<1x8x32xf32>, vector<8x8x32xf32>, vector<1x8x32xf32> -> vector<10x8x32xf32>
    %c0_29 = arith.constant 0 : index
    %c0_30 = arith.constant 0 : index
    %59 = vector.load %arg7[%c0_29, %c0_30] : memref<1x32xf32, #tpu.memory_space<vmem>>, vector<1x32xf32>
    %60 = vector.extract_strided_slice %58 {offsets = [0, 0, 0], sizes = [8, 8, 32], strides = [1, 1, 1]} : vector<10x8x32xf32> to vector<8x8x32xf32>
    %61 = vector.shape_cast %60 : vector<8x8x32xf32> to vector<64x32xf32>
    %c0_31 = arith.constant 0 : index
    %c0_32 = arith.constant 0 : index
    %c0_33 = arith.constant 0 : index
    %62 = vector.load %arg6[%c0_31, %c0_32, %c0_33] : memref<3x32x32xf32, #tpu.memory_space<vmem>>, vector<1x32x32xf32>
    %63 = vector.shape_cast %62 : vector<1x32x32xf32> to vector<32x32xf32>
    %cst_34 = arith.constant dense<0.000000e+00> : vector<64x32xf32>
    %64 = tpu.matmul %61, %63, %cst_34 {dimension_numbers = #tpu.dot_dimension_numbers<[1], [0], [0], [1], [0, 0, 1, 1], [], []>} : vector<64x32xf32>, vector<32x32xf32>, vector<64x32xf32> -> vector<64x32xf32>
    %65 = vector.extract_strided_slice %58 {offsets = [1, 0, 0], sizes = [8, 8, 32], strides = [1, 1, 1]} : vector<10x8x32xf32> to vector<8x8x32xf32>
    %66 = vector.shape_cast %65 : vector<8x8x32xf32> to vector<64x32xf32>
    %c1_35 = arith.constant 1 : index
    %c0_36 = arith.constant 0 : index
    %c0_37 = arith.constant 0 : index
    %67 = vector.load %arg6[%c1_35, %c0_36, %c0_37] : memref<3x32x32xf32, #tpu.memory_space<vmem>>, vector<1x32x32xf32>
    %68 = vector.shape_cast %67 : vector<1x32x32xf32> to vector<32x32xf32>
    %cst_38 = arith.constant dense<0.000000e+00> : vector<64x32xf32>
    %69 = tpu.matmul %66, %68, %cst_38 {dimension_numbers = #tpu.dot_dimension_numbers<[1], [0], [0], [1], [0, 0, 1, 1], [], []>} : vector<64x32xf32>, vector<32x32xf32>, vector<64x32xf32> -> vector<64x32xf32>
    %70 = arith.addf %64, %69 : vector<64x32xf32>
    %71 = vector.extract_strided_slice %58 {offsets = [2, 0, 0], sizes = [8, 8, 32], strides = [1, 1, 1]} : vector<10x8x32xf32> to vector<8x8x32xf32>
    %72 = vector.shape_cast %71 : vector<8x8x32xf32> to vector<64x32xf32>
    %c2_39 = arith.constant 2 : index
    %c0_40 = arith.constant 0 : index
    %c0_41 = arith.constant 0 : index
    %73 = vector.load %arg6[%c2_39, %c0_40, %c0_41] : memref<3x32x32xf32, #tpu.memory_space<vmem>>, vector<1x32x32xf32>
    %74 = vector.shape_cast %73 : vector<1x32x32xf32> to vector<32x32xf32>
    %cst_42 = arith.constant dense<0.000000e+00> : vector<64x32xf32>
    %75 = tpu.matmul %72, %74, %cst_42 {dimension_numbers = #tpu.dot_dimension_numbers<[1], [0], [0], [1], [0, 0, 1, 1], [], []>} : vector<64x32xf32>, vector<32x32xf32>, vector<64x32xf32> -> vector<64x32xf32>
    %76 = arith.addf %70, %75 : vector<64x32xf32>
    %77 = vector.broadcast %59 : vector<1x32xf32> to vector<64x32xf32>
    %78 = arith.addf %76, %77 : vector<64x32xf32>
    %cst_43 = arith.constant 0.000000e+00 : f32
    %79 = vector.broadcast %cst_43 : f32 to vector<64x32xf32>
    %80 = arith.maximumf %78, %79 : vector<64x32xf32>
    %81 = vector.shape_cast %80 : vector<64x32xf32> to vector<8x8x32xf32>
    %82 = vector.shape_cast %81 : vector<8x8x32xf32> to vector<4x2x8x32xf32>
    %83 = vector.extract_strided_slice %82 {offsets = [0, 0, 0, 0], sizes = [4, 1, 8, 32], strides = [1, 1, 1, 1]} : vector<4x2x8x32xf32> to vector<4x1x8x32xf32>
    %84 = vector.shape_cast %83 : vector<4x1x8x32xf32> to vector<4x8x32xf32>
    %cst_44 = arith.constant dense<0.000000e+00> : vector<8x32xf32>
    %85 = vector.multi_reduction <add>, %84, %cst_44 [0] : vector<4x8x32xf32> to vector<8x32xf32>
    %c0_45 = arith.constant 0 : index
    %c0_46 = arith.constant 0 : index
    %86 = vector.load %arg8[%c0_45, %c0_46] : memref<32x128xf32, #tpu.memory_space<vmem>>, vector<32x128xf32>
    %cst_47 = arith.constant dense<0.000000e+00> : vector<8x128xf32>
    %87 = tpu.matmul %85, %86, %cst_47 {dimension_numbers = #tpu.dot_dimension_numbers<[1], [0], [0], [1], [0, 0, 1, 1], [], []>} : vector<8x32xf32>, vector<32x128xf32>, vector<8x128xf32> -> vector<8x128xf32>
    %c0_48 = arith.constant 0 : index
    %88 = memref.load %arg9[%c0_48] : memref<1xf32, #tpu.memory_space<smem>>
    %89 = vector.broadcast %88 : f32 to vector<8x128xf32>
    %90 = arith.addf %87, %89 : vector<8x128xf32>
    %c0_49 = arith.constant 0 : index
    %c0_50 = arith.constant 0 : index
    %91 = vector.load %arg10[%c0_49, %c0_50] : memref<8x128xf32, #tpu.memory_space<vmem>>, vector<8x128xf32>
    tpu.vector_store %arg10[%c0_49, %c0_50], %90 {strides = array<i32>} : memref<8x128xf32, #tpu.memory_space<vmem>>, vector<8x128xf32>,
    return
  }
  func.func @transform_0(%arg0: i32) -> (i32, i32, i32) {
    %c0_i32 = arith.constant 0 : i32
    %c0_i32_0 = arith.constant 0 : i32
    %c0_i32_1 = arith.constant 0 : i32
    return %c0_i32, %arg0, %c0_i32_0 : i32, i32, i32
  }
  func.func @transform_1(%arg0: i32) -> (i32, i32, i32) {
    %c0_i32 = arith.constant 0 : i32
    %c0_i32_0 = arith.constant 0 : i32
    %c0_i32_1 = arith.constant 0 : i32
    %c0_i32_2 = arith.constant 0 : i32
    return %c0_i32, %c0_i32_0, %c0_i32_1 : i32, i32, i32
  }
  func.func @transform_2(%arg0: i32) -> (i32, i32) {
    %c0_i32 = arith.constant 0 : i32
    %c0_i32_0 = arith.constant 0 : i32
    %c0_i32_1 = arith.constant 0 : i32
    return %c0_i32, %c0_i32_0 : i32, i32
  }
  func.func @transform_3(%arg0: i32) -> (i32, i32, i32) {
    %c0_i32 = arith.constant 0 : i32
    %c0_i32_0 = arith.constant 0 : i32
    %c0_i32_1 = arith.constant 0 : i32
    %c0_i32_2 = arith.constant 0 : i32
    return %c0_i32, %c0_i32_0, %c0_i32_1 : i32, i32, i32
  }
  func.func @transform_4(%arg0: i32) -> (i32, i32) {
    %c0_i32 = arith.constant 0 : i32
    %c0_i32_0 = arith.constant 0 : i32
    %c0_i32_1 = arith.constant 0 : i32
    return %c0_i32, %c0_i32_0 : i32, i32
  }
  func.func @transform_5(%arg0: i32) -> (i32, i32, i32) {
    %c0_i32 = arith.constant 0 : i32
    %c0_i32_0 = arith.constant 0 : i32
    %c0_i32_1 = arith.constant 0 : i32
    %c0_i32_2 = arith.constant 0 : i32
    return %c0_i32, %c0_i32_0, %c0_i32_1 : i32, i32, i32
  }
  func.func @transform_6(%arg0: i32) -> (i32, i32) {
    %c0_i32 = arith.constant 0 : i32
    %c0_i32_0 = arith.constant 0 : i32
    %c0_i32_1 = arith.constant 0 : i32
    return %c0_i32, %c0_i32_0 : i32, i32
  }
  func.func @transform_7(%arg0: i32) -> (i32, i32) {
    %c0_i32 = arith.constant 0 : i32
    %c0_i32_0 = arith.constant 0 : i32
    %c0_i32_1 = arith.constant 0 : i32
    return %c0_i32, %c0_i32_0 : i32, i32
  }
  func.func @transform_8(%arg0: i32) -> i32 {
    %c0_i32 = arith.constant 0 : i32
    %c0_i32_0 = arith.constant 0 : i32
    return %c0_i32 : i32
  }
  func.func @transform_9(%arg0: i32) -> (i32, i32) {
    %c0_i32 = arith.constant 0 : i32
    %c0_i32_0 = arith.constant 0 : i32
    return %arg0, %c0_i32 : i32, i32
  }
}

</mosaic_0001>

<llo_original>
// kernel: convnet_gapmf_forward.1
$region0: #{convnet_gapmf_forward.1}
  #allocation0 [shape = 'u32[]', space=smem, size = 0x4, offset = 0x4, fixed_abs, tag = 'smem constant byte address 0x4 - core index']
  #allocation1 [shape = 'u32[72,128]{1,0:T(1,128)}', space=vmem, size = 0x9000, scoped, tag = 'internal scratch']
  #allocation2 [shape = 'f32[1]{0:T(128)S(6)}', space=smem, size = 0x200, scoped, tag = 'scoped memory for convnet_gapmf_forward.1']
  %s0 = inlined_call_operand.vmem [shape: f32[16,8,3], index: 0, kind: input, shape index: {}]
  %s1 = inlined_call_operand.vmem [shape: f32[3,3,32], index: 1, kind: input, shape index: {}]
  %s2 = inlined_call_operand.vmem [shape: f32[1,32], index: 2, kind: input, shape index: {}]
  %s3 = inlined_call_operand.vmem [shape: f32[3,32,32], index: 3, kind: input, shape index: {}]
  %s4 = inlined_call_operand.vmem [shape: f32[1,32], index: 4, kind: input, shape index: {}]
  %s5 = inlined_call_operand.vmem [shape: f32[3,32,32], index: 5, kind: input, shape index: {}]
  %s6 = inlined_call_operand.vmem [shape: f32[1,32], index: 6, kind: input, shape index: {}]
  %s7 = inlined_call_operand.vmem [shape: f32[32,128], index: 7, kind: input, shape index: {}]
  %s8 = inlined_call_operand.<no memory space> [shape: f32[1], index: 8, kind: input, shape index: {}]
  %s9 = inlined_call_operand.vmem [shape: f32[8,128], index: 9, kind: output, shape index: {}]
  %s10 = sld [smem:[#allocation0]]
  $region46: #{convnet_gapmf_forward.1} parent=0
    _
  %s12 = ssub.s32 1, %s10
  %s13 = scalar_select 0, %s12, %s10
  %14 = sst [smem:[#allocation2]] %s8
  // Predicated region
  $region2: #{convnet_gapmf_forward.1} parent=0 // pred_check
    _
  $region3: #{convnet_gapmf_forward.1} parent=0 // pred_check_branch
    %16 = sbr.rel (0) target = $region5
  $region4: #{convnet_gapmf_forward.1} parent=0 // pred_region
    _
  $region5: #{convnet_gapmf_forward.1} parent=0 // pred_fallthru
    _
  // Predicated region
  $region6: #{convnet_gapmf_forward.1} parent=0 // pred_check
    _
  $region7: #{convnet_gapmf_forward.1} parent=0 // pred_check_branch
    %18 = sbr.rel (0) target = $region9
  $region8: #{convnet_gapmf_forward.1} parent=0 // pred_region
    _
  $region9: #{convnet_gapmf_forward.1} parent=0 // pred_fallthru
    _
  // Predicated region
  $region10: #{convnet_gapmf_forward.1} parent=0 // pred_check
    _
  $region11: #{convnet_gapmf_forward.1} parent=0 // pred_check_branch
    %20 = sbr.rel (0) target = $region13
  $region12: #{convnet_gapmf_forward.1} parent=0 // pred_region
    _
  $region13: #{convnet_gapmf_forward.1} parent=0 // pred_fallthru
    _
  // Predicated region
  $region14: #{convnet_gapmf_forward.1} parent=0 // pred_check
    _
  $region15: #{convnet_gapmf_forward.1} parent=0 // pred_check_branch
    %22 = sbr.rel (0) target = $region17
  $region16: #{convnet_gapmf_forward.1} parent=0 // pred_region
    _
  $region17: #{convnet_gapmf_forward.1} parent=0 // pred_fallthru
    _
  // Predicated region
  $region18: #{convnet_gapmf_forward.1} parent=0 // pred_check
    _
  $region19: #{convnet_gapmf_forward.1} parent=0 // pred_check_branch
    %24 = sbr.rel (0) target = $region21
  $region20: #{convnet_gapmf_forward.1} parent=0 // pred_region
    _
  $region21: #{convnet_gapmf_forward.1} parent=0 // pred_fallthru
    _
  // Predicated region
  $region22: #{convnet_gapmf_forward.1} parent=0 // pred_check
    _
  $region23: #{convnet_gapmf_forward.1} parent=0 // pred_check_branch
    %26 = sbr.rel (0) target = $region25
  $region24: #{convnet_gapmf_forward.1} parent=0 // pred_region
    _
  $region25: #{convnet_gapmf_forward.1} parent=0 // pred_fallthru
    _
  // Predicated region
  $region26: #{convnet_gapmf_forward.1} parent=0 // pred_check
    _
  $region27: #{convnet_gapmf_forward.1} parent=0 // pred_check_branch
    %28 = sbr.rel (0) target = $region29
  $region28: #{convnet_gapmf_forward.1} parent=0 // pred_region
    _
  $region29: #{convnet_gapmf_forward.1} parent=0 // pred_fallthru
    _
  // Predicated region
  $region30: #{convnet_gapmf_forward.1} parent=0 // pred_check
    _
  $region31: #{convnet_gapmf_forward.1} parent=0 // pred_check_branch
    %30 = sbr.rel (0) target = $region33
  $region32: #{convnet_gapmf_forward.1} parent=0 // pred_region
    _
  $region33: #{convnet_gapmf_forward.1} parent=0 // pred_fallthru
    _
  // Predicated region
  $region34: #{convnet_gapmf_forward.1} parent=0 // pred_check
    _
  $region35: #{convnet_gapmf_forward.1} parent=0 // pred_check_branch
    %32 = sbr.rel (0) target = $region37
  $region36: #{convnet_gapmf_forward.1} parent=0 // pred_region
    _
  $region37: #{convnet_gapmf_forward.1} parent=0 // pred_fallthru
    _
  %v33 = vld [vmem:[%s0] sm:$0xff]
  %v34 = vld [vmem:[%s0 + $0x8] sm:$0xff]
  %v35 = vld [vmem:[%s0 + $0x10] sm:$0xff]
  %v36 = vld [vmem:[%s0 + $0x18] sm:$0xff]
  %v37 = vld [vmem:[%s0 + $0x20] sm:$0xff]
  %v38 = vld [vmem:[%s0 + $0x28] sm:$0xff]
  %v39 = vld [vmem:[%s0 + $0x30] sm:$0xff]
  %v40 = vld [vmem:[%s0 + $0x38] sm:$0xff]
  %v41 = vld [vmem:[%s0 + $0x40] sm:$0xff]
  %v42 = vld [vmem:[%s0 + $0x48] sm:$0xff]
  %v43 = vld [vmem:[%s0 + $0x50] sm:$0xff]
  %v44 = vld [vmem:[%s0 + $0x58] sm:$0xff]
  %v45 = vld [vmem:[%s0 + $0x60] sm:$0xff]
  %v46 = vld [vmem:[%s0 + $0x68] sm:$0xff]
  %v47 = vld [vmem:[%s0 + $0x70] sm:$0xff]
  %v48 = vld [vmem:[%s0 + $0x78] sm:$0xff]
  %v49 = vld [vmem:[%s2] sm:$0x1]
  %v50 = vld [vmem:[%s1] sm:$0x7]
  %s51 = scalar_lea.vmem %s1, 4
  %v52 = vld [vmem:[%s51] sm:$0x7]
  %vm53 = vcmask 23552
  %v55 = vsel %vm53, %v33, 0
  %v58 = vsel %vm53, %v34, 0
  %v61 = vsel %vm53, %v35, 0
  %v64 = vsel %vm53, %v36, 0
  %v67 = vsel %vm53, %v37, 0
  %v70 = vsel %vm53, %v38, 0
  %v73 = vsel %vm53, %v39, 0
  %v76 = vsel %vm53, %v40, 0
  %v79 = vsel %vm53, %v41, 0
  %v82 = vsel %vm53, %v42, 0
  %v85 = vsel %vm53, %v43, 0
  %v88 = vsel %vm53, %v44, 0
  %v91 = vsel %vm53, %v45, 0
  %v94 = vsel %vm53, %v46, 0
  %v97 = vsel %vm53, %v47, 0
  %v100 = vsel %vm53, %v48, 0
  %vm102 = vcmask 1042432
  %v104 = vsel %vm102, %v52, 0
  %106 = vmatpush.msra.mxu0 0.0
  %107 = vmatpush.msra.mxu0 0.0
  %108 = vmatpush.msra.mxu0 0.0
  %109 = vmatpush.msra.mxu0 0.0
  %110 = vmatpush.msra.mxu0 0.0
  %111 = vmatpush.msra.mxu0 0.0
  %112 = vmatpush.msra.mxu0 0.0
  %113 = vmatpush.msra.mxu0 0.0
  %114 = vmatpush.msra.mxu0 0.0
  %115 = vmatpush.msra.mxu0 0.0
  %116 = vmatpush.msra.mxu0 0.0
  %117 = vmatpush.msra.mxu0 0.0
  %118 = vmatpush.msra.mxu0 0.0
  %119 = vmatpush.msra.mxu0 0.0
  %120 = vmatpush.msra.mxu0 0.0
  %121 = vmatpush.msra.mxu0 %v104
  %122 = vmatmul.f32.gmra.mxu0 %v55
  %v123 = vpop.f32.mrf.mxu0
  %v124 = vadd.f32 0.0, %v123
  %125 = vmatmul.f32.gmra.mxu0 %v58
  %v126 = vpop.f32.mrf.mxu0
  %127 = vmatmul.f32.gmra.mxu0 %v61
  %v128 = vpop.f32.mrf.mxu0
  %v129 = vadd.f32 0.0, %v128
  %130 = vmatmul.f32.gmra.mxu0 %v64
  %v131 = vpop.f32.mrf.mxu0
  %132 = vmatmul.f32.gmra.mxu0 %v67
  %v133 = vpop.f32.mrf.mxu0
  %v134 = vadd.f32 0.0, %v133
  %135 = vmatmul.f32.gmra.mxu0 %v70
  %v136 = vpop.f32.mrf.mxu0
  %137 = vmatmul.f32.gmra.mxu0 %v73
  %v138 = vpop.f32.mrf.mxu0
  %v139 = vadd.f32 0.0, %v138
  %140 = vmatmul.f32.gmra.mxu0 %v76
  %v141 = vpop.f32.mrf.mxu0
  %142 = vmatmul.f32.gmra.mxu0 %v79
  %v143 = vpop.f32.mrf.mxu0
  %v144 = vadd.f32 0.0, %v143
  %145 = vmatmul.f32.gmra.mxu0 %v82
  %v146 = vpop.f32.mrf.mxu0
  %147 = vmatmul.f32.gmra.mxu0 %v85
  %v148 = vpop.f32.mrf.mxu0
  %v149 = vadd.f32 0.0, %v148
  %150 = vmatmul.f32.gmra.mxu0 %v88
  %v151 = vpop.f32.mrf.mxu0
  %152 = vmatmul.f32.gmra.mxu0 %v91
  %v153 = vpop.f32.mrf.mxu0
  %v154 = vadd.f32 0.0, %v153
  %155 = vmatmul.f32.gmra.mxu0 %v94
  %v156 = vpop.f32.mrf.mxu0
  %157 = vmatmul.f32.gmra.mxu0 %v97
  %v158 = vpop.f32.mrf.mxu0
  %v159 = vadd.f32 0.0, %v158
  %160 = vmatmul.f32.gmra.mxu0 %v100
  %v161 = vpop.f32.mrf.mxu0
  %162 = vdwg.mxu0
  %v164 = vsel %vm102, %v50, 0
  %166 = vmatpush.msra.mxu0 0.0
  %167 = vmatpush.msra.mxu0 0.0
  %168 = vmatpush.msra.mxu0 0.0
  %169 = vmatpush.msra.mxu0 0.0
  %170 = vmatpush.msra.mxu0 0.0
  %171 = vmatpush.msra.mxu0 0.0
  %172 = vmatpush.msra.mxu0 0.0
  %173 = vmatpush.msra.mxu0 0.0
  %174 = vmatpush.msra.mxu0 0.0
  %175 = vmatpush.msra.mxu0 0.0
  %176 = vmatpush.msra.mxu0 0.0
  %177 = vmatpush.msra.mxu0 0.0
  %178 = vmatpush.msra.mxu0 0.0
  %179 = vmatpush.msra.mxu0 0.0
  %180 = vmatpush.msra.mxu0 0.0
  %181 = vmatpush.msra.mxu0 %v164
  %182 = vmatmul.f32.gmra.mxu0 %v100
  %v183 = vpop.f32.mrf.mxu0
  %v184 = vadd.f32 %v124, %v183
  %185 = vmatmul.f32.gmra.mxu0 %v55
  %v186 = vpop.f32.mrf.mxu0
  %187 = vmatmul.f32.gmra.mxu0 %v58
  %v188 = vpop.f32.mrf.mxu0
  %v189 = vadd.f32 %v129, %v188
  %190 = vmatmul.f32.gmra.mxu0 %v61
  %v191 = vpop.f32.mrf.mxu0
  %192 = vmatmul.f32.gmra.mxu0 %v64
  %v193 = vpop.f32.mrf.mxu0
  %v194 = vadd.f32 %v134, %v193
  %195 = vmatmul.f32.gmra.mxu0 %v67
  %v196 = vpop.f32.mrf.mxu0
  %197 = vmatmul.f32.gmra.mxu0 %v70
  %v198 = vpop.f32.mrf.mxu0
  %v199 = vadd.f32 %v139, %v198
  %200 = vmatmul.f32.gmra.mxu0 %v73
  %v201 = vpop.f32.mrf.mxu0
  %202 = vmatmul.f32.gmra.mxu0 %v76
  %v203 = vpop.f32.mrf.mxu0
  %v204 = vadd.f32 %v144, %v203
  %205 = vmatmul.f32.gmra.mxu0 %v79
  %v206 = vpop.f32.mrf.mxu0
  %207 = vmatmul.f32.gmra.mxu0 %v82
  %v208 = vpop.f32.mrf.mxu0
  %v209 = vadd.f32 %v149, %v208
  %210 = vmatmul.f32.gmra.mxu0 %v85
  %v211 = vpop.f32.mrf.mxu0
  %212 = vmatmul.f32.gmra.mxu0 %v88
  %v213 = vpop.f32.mrf.mxu0
  %v214 = vadd.f32 %v154, %v213
  %215 = vmatmul.f32.gmra.mxu0 %v91
  %v216 = vpop.f32.mrf.mxu0
  %217 = vmatmul.f32.gmra.mxu0 %v94
  %v218 = vpop.f32.mrf.mxu0
  %v219 = vadd.f32 %v159, %v218
  %220 = vmatmul.f32.gmra.mxu0 %v97
  %v221 = vpop.f32.mrf.mxu0
  %222 = vdwg.mxu0
  %s223 = scalar_lea.vmem %s1, 8
  %v224 = vld [vmem:[%s223] sm:$0x7]
  %v226 = vsel %vm102, %v224, 0
  %228 = vmatpush.msra.mxu0 0.0
  %229 = vmatpush.msra.mxu0 0.0
  %230 = vmatpush.msra.mxu0 0.0
  %231 = vmatpush.msra.mxu0 0.0
  %232 = vmatpush.msra.mxu0 0.0
  %233 = vmatpush.msra.mxu0 0.0
  %234 = vmatpush.msra.mxu0 0.0
  %235 = vmatpush.msra.mxu0 0.0
  %236 = vmatpush.msra.mxu0 0.0
  %237 = vmatpush.msra.mxu0 0.0
  %238 = vmatpush.msra.mxu0 0.0
  %239 = vmatpush.msra.mxu0 0.0
  %240 = vmatpush.msra.mxu0 0.0
  %241 = vmatpush.msra.mxu0 0.0
  %242 = vmatpush.msra.mxu0 0.0
  %243 = vmatpush.msra.mxu0 %v226
  %244 = vmatmul.f32.gmra.mxu0 %v58
  %v245 = vpop.f32.mrf.mxu0
  %v246 = vadd.f32 0.0, %v245
  %247 = vmatmul.f32.gmra.mxu0 %v61
  %v248 = vpop.f32.mrf.mxu0
  %249 = vmatmul.f32.gmra.mxu0 %v64
  %v250 = vpop.f32.mrf.mxu0
  %v251 = vadd.f32 0.0, %v250
  %252 = vmatmul.f32.gmra.mxu0 %v67
  %v253 = vpop.f32.mrf.mxu0
  %254 = vmatmul.f32.gmra.mxu0 %v70
  %v255 = vpop.f32.mrf.mxu0
  %v256 = vadd.f32 0.0, %v255
  %257 = vmatmul.f32.gmra.mxu0 %v73
  %v258 = vpop.f32.mrf.mxu0
  %259 = vmatmul.f32.gmra.mxu0 %v76
  %v260 = vpop.f32.mrf.mxu0
  %v261 = vadd.f32 0.0, %v260
  %262 = vmatmul.f32.gmra.mxu0 %v79
  %v263 = vpop.f32.mrf.mxu0
  %264 = vmatmul.f32.gmra.mxu0 %v82
  %v265 = vpop.f32.mrf.mxu0
  %v266 = vadd.f32 0.0, %v265
  %267 = vmatmul.f32.gmra.mxu0 %v85
  %v268 = vpop.f32.mrf.mxu0
  %269 = vmatmul.f32.gmra.mxu0 %v88
  %v270 = vpop.f32.mrf.mxu0
  %v271 = vadd.f32 0.0, %v270
  %272 = vmatmul.f32.gmra.mxu0 %v91
  %v273 = vpop.f32.mrf.mxu0
  %274 = vmatmul.f32.gmra.mxu0 %v94
  %v275 = vpop.f32.mrf.mxu0
  %v276 = vadd.f32 0.0, %v275
  %277 = vmatmul.f32.gmra.mxu0 %v97
  %v278 = vpop.f32.mrf.mxu0
  %279 = vmatmul.f32.gmra.mxu0 %v100
  %v280 = vpop.f32.mrf.mxu0
  %v281 = vadd.f32 0.0, %v280
  %282 = vmatmul.f32.gmra.mxu0 %v55
  %v283 = vpop.f32.mrf.mxu0
  %284 = vdwg.mxu0
  %v285 = vadd.f32 %v184, %v246
  %v286 = vadd.f32 %v189, %v251
  %v287 = vadd.f32 %v194, %v256
  %v288 = vadd.f32 %v199, %v261
  %v289 = vadd.f32 %v204, %v266
  %v290 = vadd.f32 %v209, %v271
  %v291 = vadd.f32 %v214, %v276
  %v292 = vadd.f32 %v219, %v281
  %v294 = vperm.slane %v49, 0
  %v296 = vadd.f32 %v285, %v294
  %v297 = vadd.f32 %v286, %v294
  %v298 = vadd.f32 %v287, %v294
  %v299 = vadd.f32 %v288, %v294
  %v300 = vadd.f32 %v289, %v294
  %v301 = vadd.f32 %v290, %v294
  %v302 = vadd.f32 %v291, %v294
  %v303 = vadd.f32 %v292, %v294
  %v304 = vmax.f32 %v296, 0.0
  %v305 = vmax.f32 %v297, 0.0
  %v306 = vmax.f32 %v298, 0.0
  %v307 = vmax.f32 %v299, 0.0
  %v308 = vmax.f32 %v300, 0.0
  %v309 = vmax.f32 %v301, 0.0
  %v310 = vmax.f32 %v302, 0.0
  %v311 = vmax.f32 %v303, 0.0
  %v312 = vld [vmem:[%s4] sm:$0x1]
  %v313 = vld [vmem:[%s3] sm:$0xff]
  %v314 = vld [vmem:[%s3 + $0x8] sm:$0xff]
  %v315 = vld [vmem:[%s3 + $0x10] sm:$0xff]
  %v316 = vld [vmem:[%s3 + $0x18] sm:$0xff]
  %s317 = scalar_lea.vmem %s3, 32
  %v318 = vld [vmem:[%s317] sm:$0xff]
  %v319 = vld [vmem:[%s317 + $0x8] sm:$0xff]
  %v320 = vld [vmem:[%s317 + $0x10] sm:$0xff]
  %v321 = vld [vmem:[%s317 + $0x18] sm:$0xff]
  %vm322 = vcmask 261120
  %v324 = vsel %vm322, %v304, 0
  %v327 = vsel %vm322, %v305, 0
  %v330 = vsel %vm322, %v306, 0
  %v333 = vsel %vm322, %v307, 0
  %v336 = vsel %vm322, %v308, 0
  %v339 = vsel %vm322, %v309, 0
  %v342 = vsel %vm322, %v310, 0
  %v345 = vsel %vm322, %v311, 0
  %347 = vmatpush.msra.mxu0 0.0
  %348 = vmatpush.msra.mxu0 0.0
  %349 = vmatpush.msra.mxu0 0.0
  %350 = vmatpush.msra.mxu0 0.0
  %351 = vmatpush.msra.mxu0 0.0
  %352 = vmatpush.msra.mxu0 0.0
  %353 = vmatpush.msra.mxu0 0.0
  %354 = vmatpush.msra.mxu0 0.0
  %355 = vmatpush.msra.mxu0 0.0
  %356 = vmatpush.msra.mxu0 0.0
  %357 = vmatpush.msra.mxu0 0.0
  %358 = vmatpush.msra.mxu0 0.0
  %359 = vmatpush.msra.mxu0 %v321
  %360 = vmatpush.msra.mxu0 %v320
  %361 = vmatpush.msra.mxu0 %v319
  %362 = vmatpush.msra.mxu0 %v318
  %363 = vmatmul.f32.gmra.mxu0 %v324
  %v364 = vpop.f32.mrf.mxu0
  %v365 = vadd.f32 0.0, %v364
  %366 = vmatmul.f32.gmra.mxu0 %v327
  %v367 = vpop.f32.mrf.mxu0
  %v368 = vadd.f32 0.0, %v367
  %369 = vmatmul.f32.gmra.mxu0 %v330
  %v370 = vpop.f32.mrf.mxu0
  %v371 = vadd.f32 0.0, %v370
  %372 = vmatmul.f32.gmra.mxu0 %v333
  %v373 = vpop.f32.mrf.mxu0
  %v374 = vadd.f32 0.0, %v373
  %375 = vmatmul.f32.gmra.mxu0 %v336
  %v376 = vpop.f32.mrf.mxu0
  %v377 = vadd.f32 0.0, %v376
  %378 = vmatmul.f32.gmra.mxu0 %v339
  %v379 = vpop.f32.mrf.mxu0
  %v380 = vadd.f32 0.0, %v379
  %381 = vmatmul.f32.gmra.mxu0 %v342
  %v382 = vpop.f32.mrf.mxu0
  %v383 = vadd.f32 0.0, %v382
  %384 = vmatmul.f32.gmra.mxu0 %v345
  %v385 = vpop.f32.mrf.mxu0
  %v386 = vadd.f32 0.0, %v385
  %387 = vdwg.mxu0
  %388 = vmatpush.msra.mxu0 0.0
  %389 = vmatpush.msra.mxu0 0.0
  %390 = vmatpush.msra.mxu0 0.0
  %391 = vmatpush.msra.mxu0 0.0
  %392 = vmatpush.msra.mxu0 0.0
  %393 = vmatpush.msra.mxu0 0.0
  %394 = vmatpush.msra.mxu0 0.0
  %395 = vmatpush.msra.mxu0 0.0
  %396 = vmatpush.msra.mxu0 0.0
  %397 = vmatpush.msra.mxu0 0.0
  %398 = vmatpush.msra.mxu0 0.0
  %399 = vmatpush.msra.mxu0 0.0
  %400 = vmatpush.msra.mxu0 %v316
  %401 = vmatpush.msra.mxu0 %v315
  %402 = vmatpush.msra.mxu0 %v314
  %403 = vmatpush.msra.mxu0 %v313
  %404 = vmatmul.f32.gmra.mxu0 %v345
  %v405 = vpop.f32.mrf.mxu0
  %v406 = vadd.f32 %v365, %v405
  %407 = vmatmul.f32.gmra.mxu0 %v324
  %v408 = vpop.f32.mrf.mxu0
  %v409 = vadd.f32 %v368, %v408
  %410 = vmatmul.f32.gmra.mxu0 %v327
  %v411 = vpop.f32.mrf.mxu0
  %v412 = vadd.f32 %v371, %v411
  %413 = vmatmul.f32.gmra.mxu0 %v330
  %v414 = vpop.f32.mrf.mxu0
  %v415 = vadd.f32 %v374, %v414
  %416 = vmatmul.f32.gmra.mxu0 %v333
  %v417 = vpop.f32.mrf.mxu0
  %v418 = vadd.f32 %v377, %v417
  %419 = vmatmul.f32.gmra.mxu0 %v336
  %v420 = vpop.f32.mrf.mxu0
  %v421 = vadd.f32 %v380, %v420
  %422 = vmatmul.f32.gmra.mxu0 %v339
  %v423 = vpop.f32.mrf.mxu0
  %v424 = vadd.f32 %v383, %v423
  %425 = vmatmul.f32.gmra.mxu0 %v342
  %v426 = vpop.f32.mrf.mxu0
  %v427 = vadd.f32 %v386, %v426
  %428 = vdwg.mxu0
  %s429 = scalar_lea.vmem %s3, 64
  %v430 = vld [vmem:[%s429] sm:$0xff]
  %v431 = vld [vmem:[%s429 + $0x8] sm:$0xff]
  %v432 = vld [vmem:[%s429 + $0x10] sm:$0xff]
  %v433 = vld [vmem:[%s429 + $0x18] sm:$0xff]
  %434 = vmatpush.msra.mxu0 0.0
  %435 = vmatpush.msra.mxu0 0.0
  %436 = vmatpush.msra.mxu0 0.0
  %437 = vmatpush.msra.mxu0 0.0
  %438 = vmatpush.msra.mxu0 0.0
  %439 = vmatpush.msra.mxu0 0.0
  %440 = vmatpush.msra.mxu0 0.0
  %441 = vmatpush.msra.mxu0 0.0
  %442 = vmatpush.msra.mxu0 0.0
  %443 = vmatpush.msra.mxu0 0.0
  %444 = vmatpush.msra.mxu0 0.0
  %445 = vmatpush.msra.mxu0 0.0
  %446 = vmatpush.msra.mxu0 %v433
  %447 = vmatpush.msra.mxu0 %v432
  %448 = vmatpush.msra.mxu0 %v431
  %449 = vmatpush.msra.mxu0 %v430
  %450 = vmatmul.f32.gmra.mxu0 %v327
  %v451 = vpop.f32.mrf.mxu0
  %v452 = vadd.f32 0.0, %v451
  %453 = vmatmul.f32.gmra.mxu0 %v330
  %v454 = vpop.f32.mrf.mxu0
  %v455 = vadd.f32 0.0, %v454
  %456 = vmatmul.f32.gmra.mxu0 %v333
  %v457 = vpop.f32.mrf.mxu0
  %v458 = vadd.f32 0.0, %v457
  %459 = vmatmul.f32.gmra.mxu0 %v336
  %v460 = vpop.f32.mrf.mxu0
  %v461 = vadd.f32 0.0, %v460
  %462 = vmatmul.f32.gmra.mxu0 %v339
  %v463 = vpop.f32.mrf.mxu0
  %v464 = vadd.f32 0.0, %v463
  %465 = vmatmul.f32.gmra.mxu0 %v342
  %v466 = vpop.f32.mrf.mxu0
  %v467 = vadd.f32 0.0, %v466
  %468 = vmatmul.f32.gmra.mxu0 %v345
  %v469 = vpop.f32.mrf.mxu0
  %v470 = vadd.f32 0.0, %v469
  %471 = vmatmul.f32.gmra.mxu0 %v324
  %v472 = vpop.f32.mrf.mxu0
  %v473 = vadd.f32 0.0, %v472
  %474 = vdwg.mxu0
  %v475 = vadd.f32 %v406, %v452
  %v476 = vadd.f32 %v409, %v455
  %v477 = vadd.f32 %v412, %v458
  %v478 = vadd.f32 %v415, %v461
  %v479 = vadd.f32 %v418, %v464
  %v480 = vadd.f32 %v421, %v467
  %v481 = vadd.f32 %v424, %v470
  %v482 = vadd.f32 %v427, %v473
  %v484 = vperm.slane %v312, 0
  %v486 = vadd.f32 %v475, %v484
  %v487 = vadd.f32 %v476, %v484
  %v488 = vadd.f32 %v477, %v484
  %v489 = vadd.f32 %v478, %v484
  %v490 = vadd.f32 %v479, %v484
  %v491 = vadd.f32 %v480, %v484
  %v492 = vadd.f32 %v481, %v484
  %v493 = vadd.f32 %v482, %v484
  %v494 = vmax.f32 %v486, 0.0
  %v495 = vmax.f32 %v487, 0.0
  %v496 = vmax.f32 %v488, 0.0
  %v497 = vmax.f32 %v489, 0.0
  %v498 = vmax.f32 %v490, 0.0
  %v499 = vmax.f32 %v491, 0.0
  %v500 = vmax.f32 %v492, 0.0
  %v501 = vmax.f32 %v493, 0.0
  %v502 = vld [vmem:[%s6] sm:$0x1]
  %v503 = vld [vmem:[%s5] sm:$0xff]
  %v504 = vld [vmem:[%s5 + $0x8] sm:$0xff]
  %v505 = vld [vmem:[%s5 + $0x10] sm:$0xff]
  %v506 = vld [vmem:[%s5 + $0x18] sm:$0xff]
  %s507 = scalar_lea.vmem %s5, 32
  %v508 = vld [vmem:[%s507] sm:$0xff]
  %v509 = vld [vmem:[%s507 + $0x8] sm:$0xff]
  %v510 = vld [vmem:[%s507 + $0x10] sm:$0xff]
  %v511 = vld [vmem:[%s507 + $0x18] sm:$0xff]
  %v513 = vsel %vm322, %v494, 0
  %v516 = vsel %vm322, %v495, 0
  %v519 = vsel %vm322, %v496, 0
  %v522 = vsel %vm322, %v497, 0
  %v525 = vsel %vm322, %v498, 0
  %v528 = vsel %vm322, %v499, 0
  %v531 = vsel %vm322, %v500, 0
  %v534 = vsel %vm322, %v501, 0
  %536 = vmatpush.msra.mxu0 0.0
  %537 = vmatpush.msra.mxu0 0.0
  %538 = vmatpush.msra.mxu0 0.0
  %539 = vmatpush.msra.mxu0 0.0
  %540 = vmatpush.msra.mxu0 0.0
  %541 = vmatpush.msra.mxu0 0.0
  %542 = vmatpush.msra.mxu0 0.0
  %543 = vmatpush.msra.mxu0 0.0
  %544 = vmatpush.msra.mxu0 0.0
  %545 = vmatpush.msra.mxu0 0.0
  %546 = vmatpush.msra.mxu0 0.0
  %547 = vmatpush.msra.mxu0 0.0
  %548 = vmatpush.msra.mxu0 %v511
  %549 = vmatpush.msra.mxu0 %v510
  %550 = vmatpush.msra.mxu0 %v509
  %551 = vmatpush.msra.mxu0 %v508
  %552 = vmatmul.f32.gmra.mxu0 %v513
  %v553 = vpop.f32.mrf.mxu0
  %v554 = vadd.f32 0.0, %v553
  %555 = vmatmul.f32.gmra.mxu0 %v516
  %v556 = vpop.f32.mrf.mxu0
  %557 = vmatmul.f32.gmra.mxu0 %v519
  %v558 = vpop.f32.mrf.mxu0
  %v559 = vadd.f32 0.0, %v558
  %560 = vmatmul.f32.gmra.mxu0 %v522
  %v561 = vpop.f32.mrf.mxu0
  %562 = vmatmul.f32.gmra.mxu0 %v525
  %v563 = vpop.f32.mrf.mxu0
  %v564 = vadd.f32 0.0, %v563
  %565 = vmatmul.f32.gmra.mxu0 %v528
  %v566 = vpop.f32.mrf.mxu0
  %567 = vmatmul.f32.gmra.mxu0 %v531
  %v568 = vpop.f32.mrf.mxu0
  %v569 = vadd.f32 0.0, %v568
  %570 = vmatmul.f32.gmra.mxu0 %v534
  %v571 = vpop.f32.mrf.mxu0
  %572 = vdwg.mxu0
  %573 = vmatpush.msra.mxu0 0.0
  %574 = vmatpush.msra.mxu0 0.0
  %575 = vmatpush.msra.mxu0 0.0
  %576 = vmatpush.msra.mxu0 0.0
  %577 = vmatpush.msra.mxu0 0.0
  %578 = vmatpush.msra.mxu0 0.0
  %579 = vmatpush.msra.mxu0 0.0
  %580 = vmatpush.msra.mxu0 0.0
  %581 = vmatpush.msra.mxu0 0.0
  %582 = vmatpush.msra.mxu0 0.0
  %583 = vmatpush.msra.mxu0 0.0
  %584 = vmatpush.msra.mxu0 0.0
  %585 = vmatpush.msra.mxu0 %v506
  %586 = vmatpush.msra.mxu0 %v505
  %587 = vmatpush.msra.mxu0 %v504
  %588 = vmatpush.msra.mxu0 %v503
  %589 = vmatmul.f32.gmra.mxu0 %v534
  %v590 = vpop.f32.mrf.mxu0
  %v591 = vadd.f32 %v554, %v590
  %592 = vmatmul.f32.gmra.mxu0 %v513
  %v593 = vpop.f32.mrf.mxu0
  %594 = vmatmul.f32.gmra.mxu0 %v516
  %v595 = vpop.f32.mrf.mxu0
  %v596 = vadd.f32 %v559, %v595
  %597 = vmatmul.f32.gmra.mxu0 %v519
  %v598 = vpop.f32.mrf.mxu0
  %599 = vmatmul.f32.gmra.mxu0 %v522
  %v600 = vpop.f32.mrf.mxu0
  %v601 = vadd.f32 %v564, %v600
  %602 = vmatmul.f32.gmra.mxu0 %v525
  %v603 = vpop.f32.mrf.mxu0
  %604 = vmatmul.f32.gmra.mxu0 %v528
  %v605 = vpop.f32.mrf.mxu0
  %v606 = vadd.f32 %v569, %v605
  %607 = vmatmul.f32.gmra.mxu0 %v531
  %v608 = vpop.f32.mrf.mxu0
  %609 = vdwg.mxu0
  %s610 = scalar_lea.vmem %s5, 64
  %v611 = vld [vmem:[%s610] sm:$0xff]
  %v612 = vld [vmem:[%s610 + $0x8] sm:$0xff]
  %v613 = vld [vmem:[%s610 + $0x10] sm:$0xff]
  %v614 = vld [vmem:[%s610 + $0x18] sm:$0xff]
  %615 = vmatpush.msra.mxu0 0.0
  %616 = vmatpush.msra.mxu0 0.0
  %617 = vmatpush.msra.mxu0 0.0
  %618 = vmatpush.msra.mxu0 0.0
  %619 = vmatpush.msra.mxu0 0.0
  %620 = vmatpush.msra.mxu0 0.0
  %621 = vmatpush.msra.mxu0 0.0
  %622 = vmatpush.msra.mxu0 0.0
  %623 = vmatpush.msra.mxu0 0.0
  %624 = vmatpush.msra.mxu0 0.0
  %625 = vmatpush.msra.mxu0 0.0
  %626 = vmatpush.msra.mxu0 0.0
  %627 = vmatpush.msra.mxu0 %v614
  %628 = vmatpush.msra.mxu0 %v613
  %629 = vmatpush.msra.mxu0 %v612
  %630 = vmatpush.msra.mxu0 %v611
  %631 = vmatmul.f32.gmra.mxu0 %v516
  %v632 = vpop.f32.mrf.mxu0
  %v633 = vadd.f32 0.0, %v632
  %634 = vmatmul.f32.gmra.mxu0 %v519
  %v635 = vpop.f32.mrf.mxu0
  %636 = vmatmul.f32.gmra.mxu0 %v522
  %v637 = vpop.f32.mrf.mxu0
  %v638 = vadd.f32 0.0, %v637
  %639 = vmatmul.f32.gmra.mxu0 %v525
  %v640 = vpop.f32.mrf.mxu0
  %641 = vmatmul.f32.gmra.mxu0 %v528
  %v642 = vpop.f32.mrf.mxu0
  %v643 = vadd.f32 0.0, %v642
  %644 = vmatmul.f32.gmra.mxu0 %v531
  %v645 = vpop.f32.mrf.mxu0
  %646 = vmatmul.f32.gmra.mxu0 %v534
  %v647 = vpop.f32.mrf.mxu0
  %v648 = vadd.f32 0.0, %v647
  %649 = vmatmul.f32.gmra.mxu0 %v513
  %v650 = vpop.f32.mrf.mxu0
  %651 = vdwg.mxu0
  %v652 = vadd.f32 %v591, %v633
  %v653 = vadd.f32 %v596, %v638
  %v654 = vadd.f32 %v601, %v643
  %v655 = vadd.f32 %v606, %v648
  %v657 = vperm.slane %v502, 0
  %v659 = vadd.f32 %v652, %v657
  %v660 = vadd.f32 %v653, %v657
  %v661 = vadd.f32 %v654, %v657
  %v662 = vadd.f32 %v655, %v657
  %v663 = vmax.f32 %v659, 0.0
  %v664 = vmax.f32 %v660, 0.0
  %v665 = vmax.f32 %v661, 0.0
  %v666 = vmax.f32 %v662, 0.0
  %v667 = vsel %vm322, %v663, 0.0
  %v668 = vsel %vm322, %v664, 0.0
  %v669 = vadd.f32 %v667, %v668
  %v670 = vsel %vm322, %v665, 0.0
  %v671 = vadd.f32 %v669, %v670
  %v672 = vsel %vm322, %v666, 0.0
  %v673 = vadd.f32 %v671, %v672
  %v674 = vld [vmem:[%s7] sm:$0xff]
  %v675 = vld [vmem:[%s7 + $0x8] sm:$0xff]
  %v676 = vld [vmem:[%s7 + $0x10] sm:$0xff]
  %v677 = vld [vmem:[%s7 + $0x18] sm:$0xff]
  %s678 = sld [smem:[#allocation2]]
  %v679 = vstv %s678
  %v681 = vsel %vm322, %v673, 0
  %683 = vmatpush.msra.mxu0 0.0
  %684 = vmatpush.msra.mxu0 0.0
  %685 = vmatpush.msra.mxu0 0.0
  %686 = vmatpush.msra.mxu0 0.0
  %687 = vmatpush.msra.mxu0 0.0
  %688 = vmatpush.msra.mxu0 0.0
  %689 = vmatpush.msra.mxu0 0.0
  %690 = vmatpush.msra.mxu0 0.0
  %691 = vmatpush.msra.mxu0 0.0
  %692 = vmatpush.msra.mxu0 0.0
  %693 = vmatpush.msra.mxu0 0.0
  %694 = vmatpush.msra.mxu0 0.0
  %695 = vmatpush.msra.mxu0 %v677
  %696 = vmatpush.msra.mxu0 %v676
  %697 = vmatpush.msra.mxu0 %v675
  %698 = vmatpush.msra.mxu0 %v674
  %699 = vmatmul.f32.gmra.mxu0 %v681
  %v700 = vpop.f32.mrf.mxu0
  %v701 = vadd.f32 %v679, %v700
  %702 = vdwg.mxu0
  %703 = vst [vmem:[%s9] sm:$0xff] %v701
  // Predicated region
  $region38: #{convnet_gapmf_forward.1} parent=0 // pred_check
    _
  $region39: #{convnet_gapmf_forward.1} parent=0 // pred_check_branch
    %705 = sbr.rel (0) target = $region41
  $region40: #{convnet_gapmf_forward.1} parent=0 // pred_region
    _
  $region41: #{convnet_gapmf_forward.1} parent=0 // pred_fallthru
    _
  // Predicated region
  $region42: #{convnet_gapmf_forward.1} parent=0 // pred_check
    _
  $region43: #{convnet_gapmf_forward.1} parent=0 // pred_check_branch
    %707 = sbr.rel (0) target = $region45
  $region44: #{convnet_gapmf_forward.1} parent=0 // pred_region
    _
  $region45: #{convnet_gapmf_forward.1} parent=0 // pred_fallthru
    _

</llo_original>
